<compile_context>
chip_gen: v7x
topology: tpu7x:2x2x1
jax: 0.10.0
libtpu: 0.0.40
codegen_flags: <defaults>
</compile_context>

<pallas_src>
import math

import jax
import jax.numpy as jnp
from jax.experimental import pallas as pl
from jax.experimental.pallas import tpu as pltpu


def _full2net_kernel(x_ref, w1_ref, b1_ref, w2_ref, b2_ref, w3_ref, b3_ref,
                     o_ref):
    x = x_ref[...]                       # (tb, 2)  batch-major, straight from HBM

    # Layer 1: transposed-RHS matmul (contract both minor dims, K=2) puts the
    # batch on lanes: (hid, 2) . (tb, 2)^T -> (hid, tb).  MXU has slack; this
    # keeps the tanh vregs fully lane-packed and avoids any host transpose.
    l1 = jax.lax.dot_general(w1_ref[...], x, (((1,), (1,)), ((), ())),
                             preferred_element_type=jnp.float32)
    h1 = jnp.tanh(l1 + b1_ref[...])      # (hid, tb); jnp.tanh -> native EUP push

    # Layer 2 on the MXU: (hid, hid) @ (hid, tb), f32 accumulation.
    h2 = jnp.tanh(
        jnp.dot(w2_ref[...], h1, preferred_element_type=jnp.float32)
        + b2_ref[...])                   # (hid, tb)

    # Layer 3: single output unit -> broadcast-multiply + sublane (XLU)
    # reduction; result is lane-dense (1, tb), so the store is unmasked except
    # for the ragged last tile (handled by Pallas boundary masking).
    out_sum = jnp.sum(w3_ref[...] * h2, axis=0, keepdims=True) + b3_ref[...]
    # sigmoid on a (1, tb) slab is negligible EUP work; exact form keeps the
    # 2e-5 tolerance (pl.reciprocal(approx=True) is an option if relaxed).
    o_ref[...] = jax.nn.sigmoid(out_sum).astype(o_ref.dtype)


def _cdiv(a, b):
    return -(-a // b)


def _pick_tiling(n, block_batch):
    """Lane-dense batch tile + grid length.

    Keeps tb a multiple of 128, tb <= block_batch, and (when N > 128) at least
    two — and preferably an even number of — grid blocks so both v7x
    TensorCores get work from the "parallel" grid axis.
    """
    lane_groups = _cdiv(n, 128)              # 128-wide lane groups of batch
    max_groups = block_batch // 128
    n_blocks = max(1, _cdiv(lane_groups, max_groups))
    if lane_groups > 1:
        n_blocks = max(2, n_blocks)
        n_blocks += n_blocks % 2             # prefer an even block count
    groups_per_block = _cdiv(lane_groups, n_blocks)
    tb = groups_per_block * 128
    n_blocks = _cdiv(lane_groups, groups_per_block)
    return tb, n_blocks


def full2net_forward(x, params, *, block_batch=2048):
    """x: (N, 2) float32.

    params (PyTorch layout): w1 (hid,2), b1 (hid,), w2 (hid,hid), b2 (hid,),
                             w3 (1,hid), b3 (1,).
    Returns (N, 1) float32.
    """
    n, in_dim = x.shape
    assert in_dim == 2
    assert block_batch % 128 == 0, "batch tile must be lane-dense (x128)"
    hid = params["w1"].shape[0]

    x = x.astype(jnp.float32)                # (N, 2), no transpose / pad pass
    tb, n_blocks = _pick_tiling(n, block_batch)

    w1 = params["w1"].astype(jnp.float32)                   # (hid, 2)
    b1 = params["b1"].reshape(hid, 1).astype(jnp.float32)
    w2 = params["w2"].astype(jnp.float32)                   # (hid, hid)
    b2 = params["b2"].reshape(hid, 1).astype(jnp.float32)
    w3 = params["w3"].reshape(hid, 1).astype(jnp.float32)   # column vector
    b3 = params["b3"].reshape(1, 1).astype(jnp.float32)

    # EUP-bound at scale: tell XLA about the transcendental count.
    n_work = n_blocks * tb
    cost = pl.CostEstimate(
        flops=int(n_work * (4 * hid + 2 * hid * hid + 2 * hid)),
        transcendentals=int(n_work * (2 * hid + 1)),
        bytes_accessed=int(4 * (3 * n + hid * hid + 5 * hid + 1)),
    )

    # Weights/biases never change across the grid -> single-buffer them.
    def const_spec(shape):
        return pl.BlockSpec(shape, lambda i: (0, 0),
                            pipeline_mode=pl.Buffered(1))

    out = pl.pallas_call(
        _full2net_kernel,
        out_shape=jax.ShapeDtypeStruct((1, n), jnp.float32),
        grid_spec=pltpu.PrefetchScalarGridSpec(
            num_scalar_prefetch=0,
            grid=(n_blocks,),
            in_specs=[
                pl.BlockSpec((tb, 2), lambda i: (i, 0)),   # x tile (batch rows)
                const_spec((hid, 2)),                      # w1
                const_spec((hid, 1)),                      # b1
                const_spec((hid, hid)),                    # w2
                const_spec((hid, 1)),                      # b2
                const_spec((hid, 1)),                      # w3 (column)
                const_spec((1, 1)),                        # b3
            ],
            out_specs=pl.BlockSpec((1, tb), lambda i: (0, i)),  # lane-dense out
        ),
        compiler_params=pltpu.CompilerParams(
            dimension_semantics=("parallel",)),
        cost_estimate=cost,
    )(x, w1, b1, w2, b2, w3, b3)

    # (1, N) -> (N, 1) is a pure reshape (same row-major data), no HBM pass.
    return out.reshape(n, 1)


def init_params(key, hid):
    """Deterministic synthetic init (PyTorch Linear-style uniform ranges),
    stored in PyTorch (out_features, in_features) weight layout."""
    ks = jax.random.split(key, 6)

    def lin(kw, kb, fan_in, fan_out):
        bound = 1.0 / math.sqrt(fan_in)
        w = jax.random.uniform(kw, (fan_out, fan_in), jnp.float32,
                               -bound, bound)
        b = jax.random.uniform(kb, (fan_out,), jnp.float32, -bound, bound)
        return w, b

    w1, b1 = lin(ks[0], ks[1], 2, hid)
    w2, b2 = lin(ks[2], ks[3], hid, hid)
    w3, b3 = lin(ks[4], ks[5], hid, 1)
    return dict(w1=w1, b1=b1, w2=w2, b2=b2, w3=w3, b3=b3)


def _reference(x, p):
    h1 = jnp.tanh(x @ p["w1"].T + p["b1"])
    h2 = jnp.tanh(h1 @ p["w2"].T + p["b2"])
    return jax.nn.sigmoid(h2 @ p["w3"].T + p["b3"])


if __name__ == "__main__":
    key = jax.random.PRNGKey(0)
    k_x, k_p = jax.random.split(key)

    hid = 32
    params = init_params(k_p, hid)

    # Medium batch: two lane-dense grid blocks with a ragged last tile.
    x = jax.random.normal(k_x, (1000, 2), jnp.float32)
    out = jax.block_until_ready(full2net_forward(x, params))
    ref = _reference(x, params)
    assert out.shape == (1000, 1)
    assert jnp.allclose(out, ref, atol=2e-5, rtol=2e-5)

    # Tiny batch path (single 128-wide tile, heavily masked boundary).
    x_small = jax.random.normal(k_x, (8, 2), jnp.float32)
    out_small = jax.block_until_ready(full2net_forward(x_small, params))
    ref_small = _reference(x_small, params)
    assert out_small.shape == (8, 1)
    assert jnp.allclose(out_small, ref_small, atol=2e-5, rtol=2e-5)

    print("KERNEL_OK")
</pallas_src>

<mosaic_0001>
module attributes {stable_mosaic.version = 11 : i64} {
  func.func @_full2net_kernel(%arg0: i32, %arg1: memref<512x2xf32, #tpu.memory_space<vmem>>, %arg2: memref<32x2xf32, #tpu.memory_space<vmem>>, %arg3: memref<32x1xf32, #tpu.memory_space<vmem>>, %arg4: memref<32x32xf32, #tpu.memory_space<vmem>>, %arg5: memref<32x1xf32, #tpu.memory_space<vmem>>, %arg6: memref<32x1xf32, #tpu.memory_space<vmem>>, %arg7: memref<1x1xf32, #tpu.memory_space<vmem>>, %arg8: memref<1x512xf32, #tpu.memory_space<vmem>>) attributes {dimension_semantics = [#tpu.dimension_semantics<parallel>], iteration_bounds = array<i64: 2>, scalar_prefetch = 0 : i64, scratch_operands = 0 : i64, tpu.core_type = #tpu.core_type<tc>, window_params = [{transform_indices = @transform_0, window_bounds = array<i64: 512, 2>}, {pipeline_mode = #tpu.pipeline_mode<synchronous>, transform_indices = @transform_1, window_bounds = array<i64: 32, 2>}, {pipeline_mode = #tpu.pipeline_mode<synchronous>, transform_indices = @transform_2, window_bounds = array<i64: 32, 1>}, {pipeline_mode = #tpu.pipeline_mode<synchronous>, transform_indices = @transform_3, window_bounds = array<i64: 32, 32>}, {pipeline_mode = #tpu.pipeline_mode<synchronous>, transform_indices = @transform_4, window_bounds = array<i64: 32, 1>}, {pipeline_mode = #tpu.pipeline_mode<synchronous>, transform_indices = @transform_5, window_bounds = array<i64: 32, 1>}, {pipeline_mode = #tpu.pipeline_mode<synchronous>, transform_indices = @transform_6, window_bounds = array<i64: 1, 1>}, {transform_indices = @transform_7, window_bounds = array<i64: 1, 512>}]} {
    %c0 = arith.constant 0 : index
    %c0_0 = arith.constant 0 : index
    %0 = vector.load %arg1[%c0, %c0_0] : memref<512x2xf32, #tpu.memory_space<vmem>>, vector<512x2xf32>
    %c0_1 = arith.constant 0 : index
    %c0_2 = arith.constant 0 : index
    %1 = vector.load %arg2[%c0_1, %c0_2] : memref<32x2xf32, #tpu.memory_space<vmem>>, vector<32x2xf32>
    %cst = arith.constant dense<0.000000e+00> : vector<32x512xf32>
    %2 = tpu.matmul %1, %0, %cst {dimension_numbers = #tpu.dot_dimension_numbers<[1], [1], [0], [0], [0, 0, 1, 0], [], []>} : vector<32x2xf32>, vector<512x2xf32>, vector<32x512xf32> -> vector<32x512xf32>
    %c0_3 = arith.constant 0 : index
    %c0_4 = arith.constant 0 : index
    %3 = vector.load %arg3[%c0_3, %c0_4] : memref<32x1xf32, #tpu.memory_space<vmem>>, vector<32x1xf32>
    %4 = vector.broadcast %3 : vector<32x1xf32> to vector<32x512xf32>
    %5 = arith.addf %2, %4 : vector<32x512xf32>
    %6 = math.tanh %5 : vector<32x512xf32>
    %c0_5 = arith.constant 0 : index
    %c0_6 = arith.constant 0 : index
    %7 = vector.load %arg4[%c0_5, %c0_6] : memref<32x32xf32, #tpu.memory_space<vmem>>, vector<32x32xf32>
    %cst_7 = arith.constant dense<0.000000e+00> : vector<32x512xf32>
    %8 = tpu.matmul %7, %6, %cst_7 {dimension_numbers = #tpu.dot_dimension_numbers<[1], [0], [0], [1], [0, 0, 1, 1], [], []>} : vector<32x32xf32>, vector<32x512xf32>, vector<32x512xf32> -> vector<32x512xf32>
    %c0_8 = arith.constant 0 : index
    %c0_9 = arith.constant 0 : index
    %9 = vector.load %arg5[%c0_8, %c0_9] : memref<32x1xf32, #tpu.memory_space<vmem>>, vector<32x1xf32>
    %10 = vector.broadcast %9 : vector<32x1xf32> to vector<32x512xf32>
    %11 = arith.addf %8, %10 : vector<32x512xf32>
    %12 = math.tanh %11 : vector<32x512xf32>
    %c0_10 = arith.constant 0 : index
    %c0_11 = arith.constant 0 : index
    %13 = vector.load %arg6[%c0_10, %c0_11] : memref<32x1xf32, #tpu.memory_space<vmem>>, vector<32x1xf32>
    %14 = vector.broadcast %13 : vector<32x1xf32> to vector<32x512xf32>
    %15 = arith.mulf %14, %12 : vector<32x512xf32>
    %cst_12 = arith.constant dense<0.000000e+00> : vector<512xf32>
    %16 = vector.multi_reduction <add>, %15, %cst_12 [0] : vector<32x512xf32> to vector<512xf32>
    %17 = vector.shape_cast %16 : vector<512xf32> to vector<1x512xf32>
    %c0_13 = arith.constant 0 : index
    %c0_14 = arith.constant 0 : index
    %18 = vector.load %arg7[%c0_13, %c0_14] : memref<1x1xf32, #tpu.memory_space<vmem>>, vector<1x1xf32>
    %19 = vector.broadcast %18 : vector<1x1xf32> to vector<1x512xf32>
    %20 = arith.addf %17, %19 : vector<1x512xf32>
    %21 = arith.negf %20 : vector<1x512xf32>
    %22 = math.exp %21 : vector<1x512xf32>
    %cst_15 = arith.constant 1.000000e+00 : f32
    %23 = vector.broadcast %cst_15 : f32 to vector<1x512xf32>
    %24 = arith.addf %23, %22 : vector<1x512xf32>
    %25 = arith.divf %23, %24 : vector<1x512xf32>
    %c0_16 = arith.constant 0 : index
    %c0_17 = arith.constant 0 : index
    %26 = vector.load %arg8[%c0_16, %c0_17] : memref<1x512xf32, #tpu.memory_space<vmem>>, vector<1x512xf32>
    tpu.vector_store %arg8[%c0_16, %c0_17], %25 {strides = array<i32>} : memref<1x512xf32, #tpu.memory_space<vmem>>, vector<1x512xf32>,
    return
  }
  func.func @transform_0(%arg0: i32) -> (i32, i32) {
    %c0_i32 = arith.constant 0 : i32
    %c0_i32_0 = arith.constant 0 : i32
    return %arg0, %c0_i32 : i32, i32
  }
  func.func @transform_1(%arg0: i32) -> (i32, i32) {
    %c0_i32 = arith.constant 0 : i32
    %c0_i32_0 = arith.constant 0 : i32
    %c0_i32_1 = arith.constant 0 : i32
    return %c0_i32, %c0_i32_0 : i32, i32
  }
  func.func @transform_2(%arg0: i32) -> (i32, i32) {
    %c0_i32 = arith.constant 0 : i32
    %c0_i32_0 = arith.constant 0 : i32
    %c0_i32_1 = arith.constant 0 : i32
    return %c0_i32, %c0_i32_0 : i32, i32
  }
  func.func @transform_3(%arg0: i32) -> (i32, i32) {
    %c0_i32 = arith.constant 0 : i32
    %c0_i32_0 = arith.constant 0 : i32
    %c0_i32_1 = arith.constant 0 : i32
    return %c0_i32, %c0_i32_0 : i32, i32
  }
  func.func @transform_4(%arg0: i32) -> (i32, i32) {
    %c0_i32 = arith.constant 0 : i32
    %c0_i32_0 = arith.constant 0 : i32
    %c0_i32_1 = arith.constant 0 : i32
    return %c0_i32, %c0_i32_0 : i32, i32
  }
  func.func @transform_5(%arg0: i32) -> (i32, i32) {
    %c0_i32 = arith.constant 0 : i32
    %c0_i32_0 = arith.constant 0 : i32
    %c0_i32_1 = arith.constant 0 : i32
    return %c0_i32, %c0_i32_0 : i32, i32
  }
  func.func @transform_6(%arg0: i32) -> (i32, i32) {
    %c0_i32 = arith.constant 0 : i32
    %c0_i32_0 = arith.constant 0 : i32
    %c0_i32_1 = arith.constant 0 : i32
    return %c0_i32, %c0_i32_0 : i32, i32
  }
  func.func @transform_7(%arg0: i32) -> (i32, i32) {
    %c0_i32 = arith.constant 0 : i32
    %c0_i32_0 = arith.constant 0 : i32
    return %c0_i32, %arg0 : i32, i32
  }
}

</mosaic_0001>

<llo_original>
// kernel: tpu_custom_call.1
$region0: #{tpu_custom_call.1}
  #allocation0 [shape = 'u32[]', space=smem, size = 0x4, offset = 0x4, fixed_abs, tag = 'smem constant byte address 0x4 - core index']
  #allocation1 [shape = 'u32[144,128]{1,0:T(1,128)}', space=vmem, size = 0x12000, scoped, tag = 'internal scratch']
  #allocation2 [shape = 'f32[1,1]{1,0:T(1,128)S(1)}', space=vmem, size = 0x200, scoped, tag = 'scoped memory for tpu_custom_call.1']
  %s0 = inlined_call_operand.vmem [shape: f32[1000,2], index: 0, kind: input, shape index: {}]
  %s1 = inlined_call_operand.vmem [shape: f32[32,2], index: 1, kind: input, shape index: {}]
  %s2 = inlined_call_operand.vmem [shape: f32[32,1], index: 2, kind: input, shape index: {}]
  %s3 = inlined_call_operand.vmem [shape: f32[32,32], index: 3, kind: input, shape index: {}]
  %s4 = inlined_call_operand.vmem [shape: f32[32,1], index: 4, kind: input, shape index: {}]
  %s5 = inlined_call_operand.vmem [shape: f32[32,1], index: 5, kind: input, shape index: {}]
  %s6 = inlined_call_operand.<no memory space> [shape: f32[1,1], index: 6, kind: input, shape index: {}]
  %s7 = inlined_call_operand.hbm [shape: f32[1,1000], index: 7, kind: output, shape index: {}]
  %s8 = sld [smem:[#allocation0]]
  $region61: #{tpu_custom_call.1} parent=0
    _
  %s10 = ssub.s32 1, %s8
  %s11 = scalar_select 0, %s10, %s8
  %v12 = vstv %s6
  %13 = vst [vmem:[#allocation2] sm:$0x1] %v12
  $region1: #{tpu_custom_call.1} parent=0
    #allocation3 [shape = 'u8[4096]{0}', space=vmem, size = 0x1000, scoped, tag = 'output window, operand 0']
    #allocation4 [shape = 's32[2]{0}', space=sflag, size = 0x8, scoped, tag = 'scoped memory for tpu_custom_call.1']
    %14 = vsyncpa [#allocation4], 0
    %s15 = scalar_lea.sflag [#allocation4], 1
    %16 = vsyncpa %s15, 0
    loop: start=0, step=1, limit=4
    $region2: #{tpu_custom_call.1} parent=1 // loop_pre_header
      _
    $region3: #{tpu_custom_call.1} parent=1 // loop_header
      %s18 = sphi 0, %s22
      %p19 = scmp.ge.s32.totalorder %s18, 4
      %s28 = sphi 0, %s30
      %s31 = sphi 0, %s28
      %s32 = sphi 0, %s31
      %s48 = sphi 0, %s32
      %s52 = sphi 0, %s52
      %s54 = sphi 0, %s52
      %s55 = sphi 0, %s54
      %s69 = sphi 0, %s55
      %s73 = sphi 0, %s73
      %s75 = sphi 0, %s73
      %s76 = sphi 0, %s75
      %s90 = sphi 0, %s76
      %s94 = sphi 0, %s94
      %s96 = sphi 0, %s94
      %s97 = sphi 0, %s96
      %s111 = sphi 0, %s97
      %s115 = sphi 0, %s115
      %s117 = sphi 0, %s115
      %s118 = sphi 0, %s117
      %s132 = sphi 0, %s118
      %s136 = sphi 0, %s136
      %s138 = sphi 0, %s136
      %s139 = sphi 0, %s138
      %s153 = sphi 0, %s139
      %s157 = sphi 0, %s157
      %s159 = sphi 0, %s157
      %s160 = sphi 0, %s159
      %s174 = sphi 0, %s160
      %s180 = sphi 0, %s182
      %s183 = sphi 0, %s180
      %s184 = sphi 0, %s183
      %s200 = sphi 0, %s184
    $region4: #{tpu_custom_call.1} parent=1 // loop_header_branch
      %21 = sbr.rel (%p19) target = $region8
    $region5: #{tpu_custom_call.1} parent=1 // loop_body
      %s23 = ssub.s32 %s18, 1
      %s24 = ssub.s32 %s18, 2
      %s25 = sadd.s32 %s18, 1
      %s26 = ssub.s32 %s18, %s25
      %p27 = scmp.eq.s32.totalorder %s26, 0
      %s29 = sadd.s32 %s28, 1
      %s30 = scalar_select %p27, %s28, %s29
      %p33 = pneg %p27
      %p34 = scmp.eq.s32.totalorder %s18, 1
      %p35 = por %p33, %p34
      %p36 = scmp.ne.s32.totalorder %s28, %s31
      %p37 = scmp.eq.s32.totalorder %s18, 0
      %p38 = por %p36, %p37
      %p39 = scmp.ne.s32.totalorder %s28, %s31
      %p40 = scmp.eq.s32.totalorder %s23, 1
      %p41 = por %p39, %p40
      %p42 = scmp.ne.s32.totalorder %s31, %s32
      %p43 = scmp.eq.s32.totalorder %s23, 0
      %p44 = por %p42, %p43
      %p45 = scmp.ne.s32.totalorder %s31, %s32
      %p46 = scmp.eq.s32.totalorder %s24, 1
      %p47 = por %p45, %p46
      %p49 = scmp.ne.s32.totalorder %s32, %s48
      %p50 = scmp.eq.s32.totalorder %s24, 0
      %p51 = por %p49, %p50
      %s53 = sadd.s32 %s52, 1
      %p56 = scmp.eq.s32.totalorder %s18, 1
      %p57 = scmp.ne.s32.totalorder %s52, %s54
      %p58 = scmp.eq.s32.totalorder %s18, 0
      %p59 = por %p57, %p58
      %p60 = scmp.ne.s32.totalorder %s52, %s54
      %p61 = scmp.eq.s32.totalorder %s23, 1
      %p62 = por %p60, %p61
      %p63 = scmp.ne.s32.totalorder %s54, %s55
      %p64 = scmp.eq.s32.totalorder %s23, 0
      %p65 = por %p63, %p64
      %p66 = scmp.ne.s32.totalorder %s54, %s55
      %p67 = scmp.eq.s32.totalorder %s24, 1
      %p68 = por %p66, %p67
      %p70 = scmp.ne.s32.totalorder %s55, %s69
      %p71 = scmp.eq.s32.totalorder %s24, 0
      %p72 = por %p70, %p71
      %s74 = sadd.s32 %s73, 1
      %p77 = scmp.eq.s32.totalorder %s18, 1
      %p78 = scmp.ne.s32.totalorder %s73, %s75
      %p79 = scmp.eq.s32.totalorder %s18, 0
      %p80 = por %p78, %p79
      %p81 = scmp.ne.s32.totalorder %s73, %s75
      %p82 = scmp.eq.s32.totalorder %s23, 1
      %p83 = por %p81, %p82
      %p84 = scmp.ne.s32.totalorder %s75, %s76
      %p85 = scmp.eq.s32.totalorder %s23, 0
      %p86 = por %p84, %p85
      %p87 = scmp.ne.s32.totalorder %s75, %s76
      %p88 = scmp.eq.s32.totalorder %s24, 1
      %p89 = por %p87, %p88
      %p91 = scmp.ne.s32.totalorder %s76, %s90
      %p92 = scmp.eq.s32.totalorder %s24, 0
      %p93 = por %p91, %p92
      %s95 = sadd.s32 %s94, 1
      %p98 = scmp.eq.s32.totalorder %s18, 1
      %p99 = scmp.ne.s32.totalorder %s94, %s96
      %p100 = scmp.eq.s32.totalorder %s18, 0
      %p101 = por %p99, %p100
      %p102 = scmp.ne.s32.totalorder %s94, %s96
      %p103 = scmp.eq.s32.totalorder %s23, 1
      %p104 = por %p102, %p103
      %p105 = scmp.ne.s32.totalorder %s96, %s97
      %p106 = scmp.eq.s32.totalorder %s23, 0
      %p107 = por %p105, %p106
      %p108 = scmp.ne.s32.totalorder %s96, %s97
      %p109 = scmp.eq.s32.totalorder %s24, 1
      %p110 = por %p108, %p109
      %p112 = scmp.ne.s32.totalorder %s97, %s111
      %p113 = scmp.eq.s32.totalorder %s24, 0
      %p114 = por %p112, %p113
      %s116 = sadd.s32 %s115, 1
      %p119 = scmp.eq.s32.totalorder %s18, 1
      %p120 = scmp.ne.s32.totalorder %s115, %s117
      %p121 = scmp.eq.s32.totalorder %s18, 0
      %p122 = por %p120, %p121
      %p123 = scmp.ne.s32.totalorder %s115, %s117
      %p124 = scmp.eq.s32.totalorder %s23, 1
      %p125 = por %p123, %p124
      %p126 = scmp.ne.s32.totalorder %s117, %s118
      %p127 = scmp.eq.s32.totalorder %s23, 0
      %p128 = por %p126, %p127
      %p129 = scmp.ne.s32.totalorder %s117, %s118
      %p130 = scmp.eq.s32.totalorder %s24, 1
      %p131 = por %p129, %p130
      %p133 = scmp.ne.s32.totalorder %s118, %s132
      %p134 = scmp.eq.s32.totalorder %s24, 0
      %p135 = por %p133, %p134
      %s137 = sadd.s32 %s136, 1
      %p140 = scmp.eq.s32.totalorder %s18, 1
      %p141 = scmp.ne.s32.totalorder %s136, %s138
      %p142 = scmp.eq.s32.totalorder %s18, 0
      %p143 = por %p141, %p142
      %p144 = scmp.ne.s32.totalorder %s136, %s138
      %p145 = scmp.eq.s32.totalorder %s23, 1
      %p146 = por %p144, %p145
      %p147 = scmp.ne.s32.totalorder %s138, %s139
      %p148 = scmp.eq.s32.totalorder %s23, 0
      %p149 = por %p147, %p148
      %p150 = scmp.ne.s32.totalorder %s138, %s139
      %p151 = scmp.eq.s32.totalorder %s24, 1
      %p152 = por %p150, %p151
      %p154 = scmp.ne.s32.totalorder %s139, %s153
      %p155 = scmp.eq.s32.totalorder %s24, 0
      %p156 = por %p154, %p155
      %s158 = sadd.s32 %s157, 1
      %p161 = scmp.eq.s32.totalorder %s18, 1
      %p162 = scmp.ne.s32.totalorder %s157, %s159
      %p163 = scmp.eq.s32.totalorder %s18, 0
      %p164 = por %p162, %p163
      %p165 = scmp.ne.s32.totalorder %s157, %s159
      %p166 = scmp.eq.s32.totalorder %s23, 1
      %p167 = por %p165, %p166
      %p168 = scmp.ne.s32.totalorder %s159, %s160
      %p169 = scmp.eq.s32.totalorder %s23, 0
      %p170 = por %p168, %p169
      %p171 = scmp.ne.s32.totalorder %s159, %s160
      %p172 = scmp.eq.s32.totalorder %s24, 1
      %p173 = por %p171, %p172
      %p175 = scmp.ne.s32.totalorder %s160, %s174
      %p176 = scmp.eq.s32.totalorder %s24, 0
      %p177 = por %p175, %p176
      %s178 = ssub.s32 %s18, %s25
      %p179 = scmp.eq.s32.totalorder %s178, 0
      %s181 = sadd.s32 %s180, 1
      %s182 = scalar_select %p179, %s180, %s181
      %p185 = pneg %p179
      %p186 = scmp.eq.s32.totalorder %s18, 1
      %p187 = por %p185, %p186
      %p188 = scmp.ne.s32.totalorder %s180, %s183
      %p189 = scmp.eq.s32.totalorder %s18, 0
      %p190 = por %p188, %p189
      %p191 = scmp.ne.s32.totalorder %s180, %s183
      %p192 = scmp.eq.s32.totalorder %s23, 1
      %p193 = por %p191, %p192
      %p194 = scmp.ne.s32.totalorder %s183, %s184
      %p195 = scmp.eq.s32.totalorder %s23, 0
      %p196 = por %p194, %p195
      %p197 = scmp.ne.s32.totalorder %s183, %s184
      %p198 = scmp.eq.s32.totalorder %s24, 1
      %p199 = por %p197, %p198
      %p201 = scmp.ne.s32.totalorder %s184, %s200
      %p202 = scmp.eq.s32.totalorder %s24, 0
      %p203 = por %p201, %p202
      %p204 = scmp.le.s32.totalorder 1, %s18
      %p205 = scmp.lt.s32.totalorder %s18, 3
      %p206 = pnand %p204, %p205
      %p207 = pneg %p206
      // Predicated region
      $region9: #{tpu_custom_call.1} parent=5 // pred_check
        _
      $region10: #{tpu_custom_call.1} parent=5 // pred_check_branch
        %209 = sbr.rel (%p206) target = $region12
      $region11: #{tpu_custom_call.1} parent=5 // pred_region
        %s210 = ssub.s32 %s18, 1
        // Predicated region
        $region13: #{tpu_custom_call.1} parent=11 // pred_check
          %p211 = pneg %p65
        $region14: #{tpu_custom_call.1} parent=11 // pred_check_branch
          %213 = sbr.rel (%p211) target = $region16
        $region15: #{tpu_custom_call.1} parent=11 // pred_region
          _
        $region16: #{tpu_custom_call.1} parent=11 // pred_fallthru
          _
        // Predicated region
        $region17: #{tpu_custom_call.1} parent=11 // pred_check
          %p214 = pneg %p86
        $region18: #{tpu_custom_call.1} parent=11 // pred_check_branch
          %216 = sbr.rel (%p214) target = $region20
        $region19: #{tpu_custom_call.1} parent=11 // pred_region
          _
        $region20: #{tpu_custom_call.1} parent=11 // pred_fallthru
          _
        // Predicated region
        $region21: #{tpu_custom_call.1} parent=11 // pred_check
          %p217 = pneg %p107
        $region22: #{tpu_custom_call.1} parent=11 // pred_check_branch
          %219 = sbr.rel (%p217) target = $region24
        $region23: #{tpu_custom_call.1} parent=11 // pred_region
          _
        $region24: #{tpu_custom_call.1} parent=11 // pred_fallthru
          _
        // Predicated region
        $region25: #{tpu_custom_call.1} parent=11 // pred_check
          %p220 = pneg %p128
        $region26: #{tpu_custom_call.1} parent=11 // pred_check_branch
          %222 = sbr.rel (%p220) target = $region28
        $region27: #{tpu_custom_call.1} parent=11 // pred_region
          _
        $region28: #{tpu_custom_call.1} parent=11 // pred_fallthru
          _
        // Predicated region
        $region29: #{tpu_custom_call.1} parent=11 // pred_check
          %p223 = pneg %p149
        $region30: #{tpu_custom_call.1} parent=11 // pred_check_branch
          %225 = sbr.rel (%p223) target = $region32
        $region31: #{tpu_custom_call.1} parent=11 // pred_region
          _
        $region32: #{tpu_custom_call.1} parent=11 // pred_fallthru
          _
        // Predicated region
        $region33: #{tpu_custom_call.1} parent=11 // pred_check
          %p226 = pneg %p170
        $region34: #{tpu_custom_call.1} parent=11 // pred_check_branch
          %228 = sbr.rel (%p226) target = $region36
        $region35: #{tpu_custom_call.1} parent=11 // pred_region
          _
        $region36: #{tpu_custom_call.1} parent=11 // pred_fallthru
          _
      $region12: #{tpu_custom_call.1} parent=5 // pred_fallthru
        _
      %p229 = scmp.lt.s32.totalorder %s18, 2
      // Predicated region
      $region37: #{tpu_custom_call.1} parent=5 // pred_check
        %p230 = pneg %p229
      $region38: #{tpu_custom_call.1} parent=5 // pred_check_branch
        %232 = sbr.rel (%p230) target = $region40
      $region39: #{tpu_custom_call.1} parent=5 // pred_region
        // Predicated region
        $region41: #{tpu_custom_call.1} parent=39 // pred_check
          %p233 = pneg %p38
        $region42: #{tpu_custom_call.1} parent=39 // pred_check_branch
          %235 = sbr.rel (%p233) target = $region44
        $region43: #{tpu_custom_call.1} parent=39 // pred_region
          %s236 = smul.u32 64, %s18
          %s237 = ssub.s32 125, %s236
          %p238 = scmp.lt.s32.totalorder %s237, 64
          %s239 = scalar_select %p238, %s237, 64
          %s240 = smul.u32 128, %s239
          %p241 = scmp.lt.s32.totalorder %s236, 124
          %s242 = scalar_select %p241, %s236, 124
          %s243 = smul.addr %s242, 8
          %s244 = scalar_lea.vmem %s0, %s243
          %s245 = smul.u32 64, %s18
          %s246 = ssub.s32 125, %s245
          %p247 = scmp.lt.s32.totalorder %s246, 64
          %s248 = scalar_select %p247, %s246, 64
          %s249 = smul.u32 128, %s248
        $region44: #{tpu_custom_call.1} parent=39 // pred_fallthru
          _
      $region40: #{tpu_custom_call.1} parent=5 // pred_fallthru
        _
      %p250 = scmp.le.s32.totalorder 1, %s18
      %p251 = scmp.lt.s32.totalorder %s18, 3
      %p252 = pnand %p250, %p251
      %p253 = pneg %p252
      // Predicated region
      $region45: #{tpu_custom_call.1} parent=5 // pred_check
        _
      $region46: #{tpu_custom_call.1} parent=5 // pred_check_branch
        %255 = sbr.rel (%p252) target = $region48
      $region47: #{tpu_custom_call.1} parent=5 // pred_region
        %s256 = ssub.s32 %s18, 1
        %s257 = smul.u32 64, %s23
        %s258 = ssub.s32 125, %s257
        %p259 = scmp.lt.s32.totalorder %s258, 64
        %s260 = scalar_select %p259, %s258, 64
        %s261 = smul.u32 128, %s260
        %p262 = scmp.lt.s32.totalorder %s257, 124
        %s263 = scalar_select %p262, %s257, 124
        %s264 = smul.addr %s263, 8
        %s265 = scalar_lea.vmem %s0, %s264
        %p266 = pneg %p44
        %p267 = pneg %p41
        %p268 = pneg %p65
        %p269 = pneg %p62
        %p270 = pneg %p86
        %p271 = pneg %p83
        %p272 = pneg %p107
        %p273 = pneg %p104
        %p274 = pneg %p128
        %p275 = pneg %p125
        %p276 = pneg %p149
        %p277 = pneg %p146
        %p278 = pneg %p170
        %p279 = pneg %p167
        %p280 = pneg %p196
        %p281 = pneg %p193
        %s282 = sand.u32 %s183, 1
        %s283 = scalar_lea.sflag [#allocation4], %s282
        %s284 = sand.u32 %s183, 1
        %s285 = smul.addr %s284, 4
        %s286 = scalar_lea.vmem [#allocation3], %s285
        %s287 = smul.u32 64, %s23
        %s288 = ssub.s32 125, %s287
        %p289 = scmp.lt.s32.totalorder %s288, 64
        %s290 = scalar_select %p289, %s288, 64
        %s291 = smul.u32 128, %s290
        %p292 = scmp.lt.s32.totalorder %s287, 124
        %s293 = scalar_select %p292, %s287, 124
        %s294 = smul.addr %s293, 8
        %s295 = scalar_lea.vmem %s0, %s294
        %s296 = smul.u32 64, %s23
        %s297 = ssub.s32 125, %s296
        %p298 = scmp.lt.s32.totalorder %s297, 64
        %s299 = scalar_select %p298, %s297, 64
        %s300 = smul.u32 128, %s299
        %s301 = smul.u32 4, %s23
        %v302 = vld [vmem:[%s295] sm:$0xff]
        %v303 = vld [vmem:[%s295 + $0x8] sm:$0xff]
        %v304 = vld [vmem:[%s295 + $0x10] sm:$0xff]
        %v305 = vld [vmem:[%s295 + $0x18] sm:$0xff]
        %v306 = vld [vmem:[%s295 + $0x20] sm:$0xff]
        %v307 = vld [vmem:[%s295 + $0x28] sm:$0xff]
        %v308 = vld [vmem:[%s295 + $0x30] sm:$0xff]
        %v309 = vld [vmem:[%s295 + $0x38] sm:$0xff]
        %v310 = vld [vmem:[%s295 + $0x40] sm:$0xff]
        %v311 = vld [vmem:[%s295 + $0x48] sm:$0xff]
        %v312 = vld [vmem:[%s295 + $0x50] sm:$0xff]
        %v313 = vld [vmem:[%s295 + $0x58] sm:$0xff]
        %v314 = vld [vmem:[%s295 + $0x60] sm:$0xff]
        %v315 = vld [vmem:[%s295 + $0x68] sm:$0xff]
        %v316 = vld [vmem:[%s295 + $0x70] sm:$0xff]
        %v317 = vld [vmem:[%s295 + $0x78] sm:$0xff]
        %v318 = vld [vmem:[%s295 + $0x80] sm:$0xff]
        %v319 = vld [vmem:[%s295 + $0x88] sm:$0xff]
        %v320 = vld [vmem:[%s295 + $0x90] sm:$0xff]
        %v321 = vld [vmem:[%s295 + $0x98] sm:$0xff]
        %v322 = vld [vmem:[%s295 + $0xa0] sm:$0xff]
        %v323 = vld [vmem:[%s295 + $0xa8] sm:$0xff]
        %v324 = vld [vmem:[%s295 + $0xb0] sm:$0xff]
        %v325 = vld [vmem:[%s295 + $0xb8] sm:$0xff]
        %v326 = vld [vmem:[%s295 + $0xc0] sm:$0xff]
        %v327 = vld [vmem:[%s295 + $0xc8] sm:$0xff]
        %v328 = vld [vmem:[%s295 + $0xd0] sm:$0xff]
        %v329 = vld [vmem:[%s295 + $0xd8] sm:$0xff]
        %v330 = vld [vmem:[%s295 + $0xe0] sm:$0xff]
        %v331 = vld [vmem:[%s295 + $0xe8] sm:$0xff]
        %v332 = vld [vmem:[%s295 + $0xf0] sm:$0xff]
        %v333 = vld [vmem:[%s295 + $0xf8] sm:$0xff]
        %v334 = vld [vmem:[%s295 + $0x100] sm:$0xff]
        %v335 = vld [vmem:[%s295 + $0x108] sm:$0xff]
        %v336 = vld [vmem:[%s295 + $0x110] sm:$0xff]
        %v337 = vld [vmem:[%s295 + $0x118] sm:$0xff]
        %v338 = vld [vmem:[%s295 + $0x120] sm:$0xff]
        %v339 = vld [vmem:[%s295 + $0x128] sm:$0xff]
        %v340 = vld [vmem:[%s295 + $0x130] sm:$0xff]
        %v341 = vld [vmem:[%s295 + $0x138] sm:$0xff]
        %v342 = vld [vmem:[%s295 + $0x140] sm:$0xff]
        %v343 = vld [vmem:[%s295 + $0x148] sm:$0xff]
        %v344 = vld [vmem:[%s295 + $0x150] sm:$0xff]
        %v345 = vld [vmem:[%s295 + $0x158] sm:$0xff]
        %v346 = vld [vmem:[%s295 + $0x160] sm:$0xff]
        %v347 = vld [vmem:[%s295 + $0x168] sm:$0xff]
        %v348 = vld [vmem:[%s295 + $0x170] sm:$0xff]
        %v349 = vld [vmem:[%s295 + $0x178] sm:$0xff]
        %v350 = vld [vmem:[%s295 + $0x180] sm:$0xff]
        %v351 = vld [vmem:[%s295 + $0x188] sm:$0xff]
        %v352 = vld [vmem:[%s295 + $0x190] sm:$0xff]
        %v353 = vld [vmem:[%s295 + $0x198] sm:$0xff]
        %v354 = vld [vmem:[%s295 + $0x1a0] sm:$0xff]
        %v355 = vld [vmem:[%s295 + $0x1a8] sm:$0xff]
        %v356 = vld [vmem:[%s295 + $0x1b0] sm:$0xff]
        %v357 = vld [vmem:[%s295 + $0x1b8] sm:$0xff]
        %v358 = vld [vmem:[%s295 + $0x1c0] sm:$0xff]
        %v359 = vld [vmem:[%s295 + $0x1c8] sm:$0xff]
        %v360 = vld [vmem:[%s295 + $0x1d0] sm:$0xff]
        %v361 = vld [vmem:[%s295 + $0x1d8] sm:$0xff]
        %v362 = vld [vmem:[%s295 + $0x1e0] sm:$0xff]
        %v363 = vld [vmem:[%s295 + $0x1e8] sm:$0xff]
        %v364 = vld [vmem:[%s295 + $0x1f0] sm:$0xff]
        %v365 = vld [vmem:[%s295 + $0x1f8] sm:$0xff]
        %v366 = vld [vmem:[%s1] sm:$0xff]
        %v367 = vld [vmem:[%s1 + $0x8] sm:$0xff]
        %v368 = vld [vmem:[%s1 + $0x10] sm:$0xff]
        %v369 = vld [vmem:[%s1 + $0x18] sm:$0xff]
        %v370 = vld [vmem:[%s2] sm:$0xff]
        %v371 = vld [vmem:[%s2 + $0x8] sm:$0xff]
        %v372 = vld [vmem:[%s2 + $0x10] sm:$0xff]
        %v373 = vld [vmem:[%s2 + $0x18] sm:$0xff]
        %375 = vset.pattern.permute.xlu0 0
        %376 = vperm.xlu0 %375, %v370
        %v377 = vpop.permute.xlu0 %376
        %380 = vset.pattern.permute.xlu0 0
        %381 = vperm.xlu0 %380, %v371
        %v382 = vpop.permute.xlu0 %381
        %385 = vset.pattern.permute.xlu0 0
        %386 = vperm.xlu0 %385, %v372
        %v387 = vpop.permute.xlu0 %386
        %390 = vset.pattern.permute.xlu0 0
        %391 = vperm.xlu0 %390, %v373
        %v392 = vpop.permute.xlu0 %391
        %vm394 = vcmask 15360
        %v396 = vsel %vm394, %v366, 0
        %v399 = vsel %vm394, %v367, 0
        %v402 = vsel %vm394, %v368, 0
        %v405 = vsel %vm394, %v369, 0
        %v408 = vsel %vm394, %v302, 0
        %v411 = vsel %vm394, %v303, 0
        %v414 = vsel %vm394, %v304, 0
        %v417 = vsel %vm394, %v305, 0
        %v420 = vsel %vm394, %v306, 0
        %v423 = vsel %vm394, %v307, 0
        %v426 = vsel %vm394, %v308, 0
        %v429 = vsel %vm394, %v309, 0
        %v432 = vsel %vm394, %v310, 0
        %v435 = vsel %vm394, %v311, 0
        %v438 = vsel %vm394, %v312, 0
        %v441 = vsel %vm394, %v313, 0
        %v444 = vsel %vm394, %v314, 0
        %v447 = vsel %vm394, %v315, 0
        %v450 = vsel %vm394, %v316, 0
        %v453 = vsel %vm394, %v317, 0
        %v456 = vsel %vm394, %v318, 0
        %v459 = vsel %vm394, %v319, 0
        %v462 = vsel %vm394, %v320, 0
        %v465 = vsel %vm394, %v321, 0
        %v468 = vsel %vm394, %v322, 0
        %v471 = vsel %vm394, %v323, 0
        %v474 = vsel %vm394, %v324, 0
        %v477 = vsel %vm394, %v325, 0
        %v480 = vsel %vm394, %v326, 0
        %v483 = vsel %vm394, %v327, 0
        %v486 = vsel %vm394, %v328, 0
        %v489 = vsel %vm394, %v329, 0
        %v492 = vsel %vm394, %v330, 0
        %v495 = vsel %vm394, %v331, 0
        %v498 = vsel %vm394, %v332, 0
        %v501 = vsel %vm394, %v333, 0
        %v504 = vsel %vm394, %v334, 0
        %v507 = vsel %vm394, %v335, 0
        %v510 = vsel %vm394, %v336, 0
        %v513 = vsel %vm394, %v337, 0
        %v516 = vsel %vm394, %v338, 0
        %v519 = vsel %vm394, %v339, 0
        %v522 = vsel %vm394, %v340, 0
        %v525 = vsel %vm394, %v341, 0
        %v528 = vsel %vm394, %v342, 0
        %v531 = vsel %vm394, %v343, 0
        %v534 = vsel %vm394, %v344, 0
        %v537 = vsel %vm394, %v345, 0
        %v540 = vsel %vm394, %v346, 0
        %v543 = vsel %vm394, %v347, 0
        %v546 = vsel %vm394, %v348, 0
        %v549 = vsel %vm394, %v349, 0
        %v552 = vsel %vm394, %v350, 0
        %v555 = vsel %vm394, %v351, 0
        %v558 = vsel %vm394, %v352, 0
        %v561 = vsel %vm394, %v353, 0
        %v564 = vsel %vm394, %v354, 0
        %v567 = vsel %vm394, %v355, 0
        %v570 = vsel %vm394, %v356, 0
        %v573 = vsel %vm394, %v357, 0
        %v576 = vsel %vm394, %v358, 0
        %v579 = vsel %vm394, %v359, 0
        %v582 = vsel %vm394, %v360, 0
        %v585 = vsel %vm394, %v361, 0
        %v588 = vsel %vm394, %v362, 0
        %v591 = vsel %vm394, %v363, 0
        %v594 = vsel %vm394, %v364, 0
        %v597 = vsel %vm394, %v365, 0
        %599 = vmatprep.subr.mxu0 0.0
        %600 = vmatpush1.xpose.msra.mxu0 %v408
        %601 = vmatprep.subr.mxu0 0.0
        %602 = vmatpush1.xpose.msra.mxu0 %v411
        %603 = vmatprep.subr.mxu0 0.0
        %604 = vmatpush1.xpose.msra.mxu0 %v414
        %605 = vmatprep.subr.mxu0 0.0
        %606 = vmatpush1.xpose.msra.mxu0 %v417
        %607 = vmatprep.subr.mxu0 0.0
        %608 = vmatpush1.xpose.msra.mxu0 %v420
        %609 = vmatprep.subr.mxu0 0.0
        %610 = vmatpush1.xpose.msra.mxu0 %v423
        %611 = vmatprep.subr.mxu0 0.0
        %612 = vmatpush1.xpose.msra.mxu0 %v426
        %613 = vmatprep.subr.mxu0 0.0
        %614 = vmatpush1.xpose.msra.mxu0 %v429
        %615 = vmatprep.subr.mxu0 0.0
        %616 = vmatpush1.xpose.msra.mxu0 %v432
        %617 = vmatprep.subr.mxu0 0.0
        %618 = vmatpush1.xpose.msra.mxu0 %v435
        %619 = vmatprep.subr.mxu0 0.0
        %620 = vmatpush1.xpose.msra.mxu0 %v438
        %621 = vmatprep.subr.mxu0 0.0
        %622 = vmatpush1.xpose.msra.mxu0 %v441
        %623 = vmatprep.subr.mxu0 0.0
        %624 = vmatpush1.xpose.msra.mxu0 %v444
        %625 = vmatprep.subr.mxu0 0.0
        %626 = vmatpush1.xpose.msra.mxu0 %v447
        %627 = vmatprep.subr.mxu0 0.0
        %628 = vmatpush1.xpose.msra.mxu0 %v450
        %629 = vmatprep.subr.mxu0 0.0
        %630 = vmatpush1.xpose.msra.mxu0 %v453
        %631 = vmatprep.subr.mxu0 0.0
        %632 = vmatpush1.xpose.msra.mxu0 %v456
        %633 = vmatprep.subr.mxu0 0.0
        %634 = vmatpush1.xpose.msra.mxu0 %v459
        %635 = vmatprep.subr.mxu0 0.0
        %636 = vmatpush1.xpose.msra.mxu0 %v462
        %637 = vmatprep.subr.mxu0 0.0
        %638 = vmatpush1.xpose.msra.mxu0 %v465
        %639 = vmatprep.subr.mxu0 0.0
        %640 = vmatpush1.xpose.msra.mxu0 %v468
        %641 = vmatprep.subr.mxu0 0.0
        %642 = vmatpush1.xpose.msra.mxu0 %v471
        %643 = vmatprep.subr.mxu0 0.0
        %644 = vmatpush1.xpose.msra.mxu0 %v474
        %645 = vmatprep.subr.mxu0 0.0
        %646 = vmatpush1.xpose.msra.mxu0 %v477
        %647 = vmatprep.subr.mxu0 0.0
        %648 = vmatpush1.xpose.msra.mxu0 %v480
        %649 = vmatprep.subr.mxu0 0.0
        %650 = vmatpush1.xpose.msra.mxu0 %v483
        %651 = vmatprep.subr.mxu0 0.0
        %652 = vmatpush1.xpose.msra.mxu0 %v486
        %653 = vmatprep.subr.mxu0 0.0
        %654 = vmatpush1.xpose.msra.mxu0 %v489
        %655 = vmatprep.subr.mxu0 0.0
        %656 = vmatpush1.xpose.msra.mxu0 %v492
        %657 = vmatprep.subr.mxu0 0.0
        %658 = vmatpush1.xpose.msra.mxu0 %v495
        %659 = vmatprep.subr.mxu0 0.0
        %660 = vmatpush1.xpose.msra.mxu0 %v498
        %661 = vmatprep.subr.mxu0 0.0
        %662 = vmatpush1.xpose.msra.mxu0 %v501
        %663 = vmatprep.mubr.f32.mxu0 0.0
        %664 = vmatmul.mubr.f32.gmra.mrb[0].mxu0 %v396
        %v665 = vpop.f32.mrb[0].mxu0
        %v666 = vadd.f32 %v377, %v665
        %v667 = vpop.f32.mrb[0].mxu0
        %v668 = vadd.f32 %v377, %v667
        %669 = vmatprep.mubr.f32.mxu0 0.0
        %670 = vmatmul.mubr.f32.gmra.mrb[0].mxu0 %v399
        %v671 = vpop.f32.mrb[0].mxu0
        %v672 = vadd.f32 %v382, %v671
        %v673 = vpop.f32.mrb[0].mxu0
        %v674 = vadd.f32 %v382, %v673
        %675 = vmatprep.mubr.f32.mxu0 0.0
        %676 = vmatmul.mubr.f32.gmra.mrb[0].mxu0 %v402
        %v677 = vpop.f32.mrb[0].mxu0
        %v678 = vadd.f32 %v387, %v677
        %v679 = vpop.f32.mrb[0].mxu0
        %v680 = vadd.f32 %v387, %v679
        %681 = vmatprep.mubr.f32.mxu0 0.0
        %682 = vmatmul.mubr.f32.gmra.mrb[0].mxu0 %v405
        %v683 = vpop.f32.mrb[0].mxu0
        %v684 = vadd.f32 %v392, %v683
        %v685 = vpop.f32.mrb[0].mxu0
        %v686 = vadd.f32 %v392, %v685
        %687 = vdwg.mxu0
        %688 = vmatprep.subr.mxu0 0.0
        %689 = vmatpush1.xpose.msra.mxu0 %v504
        %690 = vmatprep.subr.mxu0 0.0
        %691 = vmatpush1.xpose.msra.mxu0 %v507
        %692 = vmatprep.subr.mxu0 0.0
        %693 = vmatpush1.xpose.msra.mxu0 %v510
        %694 = vmatprep.subr.mxu0 0.0
        %695 = vmatpush1.xpose.msra.mxu0 %v513
        %696 = vmatprep.subr.mxu0 0.0
        %697 = vmatpush1.xpose.msra.mxu0 %v516
        %698 = vmatprep.subr.mxu0 0.0
        %699 = vmatpush1.xpose.msra.mxu0 %v519
        %700 = vmatprep.subr.mxu0 0.0
        %701 = vmatpush1.xpose.msra.mxu0 %v522
        %702 = vmatprep.subr.mxu0 0.0
        %703 = vmatpush1.xpose.msra.mxu0 %v525
        %704 = vmatprep.subr.mxu0 0.0
        %705 = vmatpush1.xpose.msra.mxu0 %v528
        %706 = vmatprep.subr.mxu0 0.0
        %707 = vmatpush1.xpose.msra.mxu0 %v531
        %708 = vmatprep.subr.mxu0 0.0
        %709 = vmatpush1.xpose.msra.mxu0 %v534
        %710 = vmatprep.subr.mxu0 0.0
        %711 = vmatpush1.xpose.msra.mxu0 %v537
        %712 = vmatprep.subr.mxu0 0.0
        %713 = vmatpush1.xpose.msra.mxu0 %v540
        %714 = vmatprep.subr.mxu0 0.0
        %715 = vmatpush1.xpose.msra.mxu0 %v543
        %716 = vmatprep.subr.mxu0 0.0
        %717 = vmatpush1.xpose.msra.mxu0 %v546
        %718 = vmatprep.subr.mxu0 0.0
        %719 = vmatpush1.xpose.msra.mxu0 %v549
        %720 = vmatprep.subr.mxu0 0.0
        %721 = vmatpush1.xpose.msra.mxu0 %v552
        %722 = vmatprep.subr.mxu0 0.0
        %723 = vmatpush1.xpose.msra.mxu0 %v555
        %724 = vmatprep.subr.mxu0 0.0
        %725 = vmatpush1.xpose.msra.mxu0 %v558
        %726 = vmatprep.subr.mxu0 0.0
        %727 = vmatpush1.xpose.msra.mxu0 %v561
        %728 = vmatprep.subr.mxu0 0.0
        %729 = vmatpush1.xpose.msra.mxu0 %v564
        %730 = vmatprep.subr.mxu0 0.0
        %731 = vmatpush1.xpose.msra.mxu0 %v567
        %732 = vmatprep.subr.mxu0 0.0
        %733 = vmatpush1.xpose.msra.mxu0 %v570
        %734 = vmatprep.subr.mxu0 0.0
        %735 = vmatpush1.xpose.msra.mxu0 %v573
        %736 = vmatprep.subr.mxu0 0.0
        %737 = vmatpush1.xpose.msra.mxu0 %v576
        %738 = vmatprep.subr.mxu0 0.0
        %739 = vmatpush1.xpose.msra.mxu0 %v579
        %740 = vmatprep.subr.mxu0 0.0
        %741 = vmatpush1.xpose.msra.mxu0 %v582
        %742 = vmatprep.subr.mxu0 0.0
        %743 = vmatpush1.xpose.msra.mxu0 %v585
        %744 = vmatprep.subr.mxu0 0.0
        %745 = vmatpush1.xpose.msra.mxu0 %v588
        %746 = vmatprep.subr.mxu0 0.0
        %747 = vmatpush1.xpose.msra.mxu0 %v591
        %748 = vmatprep.subr.mxu0 0.0
        %749 = vmatpush1.xpose.msra.mxu0 %v594
        %750 = vmatprep.subr.mxu0 0.0
        %751 = vmatpush1.xpose.msra.mxu0 %v597
        %752 = vmatprep.mubr.f32.mxu0 0.0
        %753 = vmatmul.mubr.f32.gmra.mrb[0].mxu0 %v396
        %v754 = vpop.f32.mrb[0].mxu0
        %v755 = vadd.f32 %v377, %v754
        %v756 = vpop.f32.mrb[0].mxu0
        %v757 = vadd.f32 %v377, %v756
        %758 = vmatprep.mubr.f32.mxu0 0.0
        %759 = vmatmul.mubr.f32.gmra.mrb[0].mxu0 %v399
        %v760 = vpop.f32.mrb[0].mxu0
        %v761 = vadd.f32 %v382, %v760
        %v762 = vpop.f32.mrb[0].mxu0
        %v763 = vadd.f32 %v382, %v762
        %764 = vmatprep.mubr.f32.mxu0 0.0
        %765 = vmatmul.mubr.f32.gmra.mrb[0].mxu0 %v402
        %v766 = vpop.f32.mrb[0].mxu0
        %v767 = vadd.f32 %v387, %v766
        %v768 = vpop.f32.mrb[0].mxu0
        %v769 = vadd.f32 %v387, %v768
        %770 = vmatprep.mubr.f32.mxu0 0.0
        %771 = vmatmul.mubr.f32.gmra.mrb[0].mxu0 %v405
        %v772 = vpop.f32.mrb[0].mxu0
        %v773 = vadd.f32 %v392, %v772
        %v774 = vpop.f32.mrb[0].mxu0
        %v775 = vadd.f32 %v392, %v774
        %776 = vdwg.mxu0
        %v777 = vtanh.pop %v666
        %v778 = vtanh.pop %v668
        %v779 = vtanh.pop %v755
        %v780 = vtanh.pop %v757
        %v781 = vtanh.pop %v672
        %v782 = vtanh.pop %v674
        %v783 = vtanh.pop %v761
        %v784 = vtanh.pop %v763
        %v785 = vtanh.pop %v678
        %v786 = vtanh.pop %v680
        %v787 = vtanh.pop %v767
        %v788 = vtanh.pop %v769
        %v789 = vtanh.pop %v684
        %v790 = vtanh.pop %v686
        %v791 = vtanh.pop %v773
        %v792 = vtanh.pop %v775
        %v793 = vld [vmem:[%s3] sm:$0xff]
        %v794 = vld [vmem:[%s3 + $0x8] sm:$0xff]
        %v795 = vld [vmem:[%s3 + $0x10] sm:$0xff]
        %v796 = vld [vmem:[%s3 + $0x18] sm:$0xff]
        %v797 = vld [vmem:[%s4] sm:$0xff]
        %v798 = vld [vmem:[%s4 + $0x8] sm:$0xff]
        %v799 = vld [vmem:[%s4 + $0x10] sm:$0xff]
        %v800 = vld [vmem:[%s4 + $0x18] sm:$0xff]
        %802 = vset.pattern.permute.xlu0 0
        %803 = vperm.xlu0 %802, %v797
        %v804 = vpop.permute.xlu0 %803
        %807 = vset.pattern.permute.xlu0 0
        %808 = vperm.xlu0 %807, %v798
        %v809 = vpop.permute.xlu0 %808
        %812 = vset.pattern.permute.xlu0 0
        %813 = vperm.xlu0 %812, %v799
        %v814 = vpop.permute.xlu0 %813
        %817 = vset.pattern.permute.xlu0 0
        %818 = vperm.xlu0 %817, %v800
        %v819 = vpop.permute.xlu0 %818
        %vm821 = vcmask 261120
        %v823 = vsel %vm821, %v793, 0
        %v826 = vsel %vm821, %v794, 0
        %v829 = vsel %vm821, %v795, 0
        %v832 = vsel %vm821, %v796, 0
        %834 = vmatprep.subr.mxu0 %v778
        %835 = vmatpush1.msra.mxu0 %v777
        %836 = vmatprep.subr.mxu0 %v782
        %837 = vmatpush1.msra.mxu0 %v781
        %838 = vmatprep.subr.mxu0 %v786
        %839 = vmatpush1.msra.mxu0 %v785
        %840 = vmatprep.subr.mxu0 %v790
        %841 = vmatpush1.msra.mxu0 %v789
        %842 = vmatprep.subr.mxu0 0.0
        %843 = vmatpush1.msra.mxu0 0.0
        %844 = vmatprep.subr.mxu0 0.0
        %845 = vmatpush1.msra.mxu0 0.0
        %846 = vmatprep.subr.mxu0 0.0
        %847 = vmatpush1.msra.mxu0 0.0
        %848 = vmatprep.subr.mxu0 0.0
        %849 = vmatpush1.msra.mxu0 0.0
        %850 = vmatprep.subr.mxu0 0.0
        %851 = vmatpush1.msra.mxu0 0.0
        %852 = vmatprep.subr.mxu0 0.0
        %853 = vmatpush1.msra.mxu0 0.0
        %854 = vmatprep.subr.mxu0 0.0
        %855 = vmatpush1.msra.mxu0 0.0
        %856 = vmatprep.subr.mxu0 0.0
        %857 = vmatpush1.msra.mxu0 0.0
        %858 = vmatprep.subr.mxu0 0.0
        %859 = vmatpush1.msra.mxu0 0.0
        %860 = vmatprep.subr.mxu0 0.0
        %861 = vmatpush1.msra.mxu0 0.0
        %862 = vmatprep.subr.mxu0 0.0
        %863 = vmatpush1.msra.mxu0 0.0
        %864 = vmatprep.subr.mxu0 0.0
        %865 = vmatpush1.msra.mxu0 0.0
        %866 = vmatprep.subr.mxu0 0.0
        %867 = vmatpush1.msra.mxu0 0.0
        %868 = vmatprep.subr.mxu0 0.0
        %869 = vmatpush1.msra.mxu0 0.0
        %870 = vmatprep.subr.mxu0 0.0
        %871 = vmatpush1.msra.mxu0 0.0
        %872 = vmatprep.subr.mxu0 0.0
        %873 = vmatpush1.msra.mxu0 0.0
        %874 = vmatprep.subr.mxu0 0.0
        %875 = vmatpush1.msra.mxu0 0.0
        %876 = vmatprep.subr.mxu0 0.0
        %877 = vmatpush1.msra.mxu0 0.0
        %878 = vmatprep.subr.mxu0 0.0
        %879 = vmatpush1.msra.mxu0 0.0
        %880 = vmatprep.subr.mxu0 0.0
        %881 = vmatpush1.msra.mxu0 0.0
        %882 = vmatprep.subr.mxu0 0.0
        %883 = vmatpush1.msra.mxu0 0.0
        %884 = vmatprep.subr.mxu0 0.0
        %885 = vmatpush1.msra.mxu0 0.0
        %886 = vmatprep.subr.mxu0 0.0
        %887 = vmatpush1.msra.mxu0 0.0
        %888 = vmatprep.subr.mxu0 0.0
        %889 = vmatpush1.msra.mxu0 0.0
        %890 = vmatprep.subr.mxu0 0.0
        %891 = vmatpush1.msra.mxu0 0.0
        %892 = vmatprep.subr.mxu0 0.0
        %893 = vmatpush1.msra.mxu0 0.0
        %894 = vmatprep.subr.mxu0 0.0
        %895 = vmatpush1.msra.mxu0 0.0
        %896 = vmatprep.subr.mxu0 0.0
        %897 = vmatpush1.msra.mxu0 0.0
        %898 = vmatprep.mubr.f32.mxu0 0.0
        %899 = vmatmul.mubr.f32.gmra.mrb[0].mxu0 %v823
        %v900 = vpop.f32.mrb[0].mxu0
        %v901 = vadd.f32 %v804, %v900
        %v902 = vpop.f32.mrb[0].mxu0
        %v903 = vadd.f32 %v804, %v902
        %904 = vmatprep.mubr.f32.mxu0 0.0
        %905 = vmatmul.mubr.f32.gmra.mrb[0].mxu0 %v826
        %v906 = vpop.f32.mrb[0].mxu0
        %v907 = vadd.f32 %v809, %v906
        %v908 = vpop.f32.mrb[0].mxu0
        %v909 = vadd.f32 %v809, %v908
        %910 = vmatprep.mubr.f32.mxu0 0.0
        %911 = vmatmul.mubr.f32.gmra.mrb[0].mxu0 %v829
        %v912 = vpop.f32.mrb[0].mxu0
        %v913 = vadd.f32 %v814, %v912
        %v914 = vpop.f32.mrb[0].mxu0
        %v915 = vadd.f32 %v814, %v914
        %916 = vmatprep.mubr.f32.mxu0 0.0
        %917 = vmatmul.mubr.f32.gmra.mrb[0].mxu0 %v832
        %v918 = vpop.f32.mrb[0].mxu0
        %v919 = vadd.f32 %v819, %v918
        %v920 = vpop.f32.mrb[0].mxu0
        %v921 = vadd.f32 %v819, %v920
        %922 = vdwg.mxu0
        %923 = vmatprep.subr.mxu0 %v780
        %924 = vmatpush1.msra.mxu0 %v779
        %925 = vmatprep.subr.mxu0 %v784
        %926 = vmatpush1.msra.mxu0 %v783
        %927 = vmatprep.subr.mxu0 %v788
        %928 = vmatpush1.msra.mxu0 %v787
        %929 = vmatprep.subr.mxu0 %v792
        %930 = vmatpush1.msra.mxu0 %v791
        %931 = vmatprep.subr.mxu0 0.0
        %932 = vmatpush1.msra.mxu0 0.0
        %933 = vmatprep.subr.mxu0 0.0
        %934 = vmatpush1.msra.mxu0 0.0
        %935 = vmatprep.subr.mxu0 0.0
        %936 = vmatpush1.msra.mxu0 0.0
        %937 = vmatprep.subr.mxu0 0.0
        %938 = vmatpush1.msra.mxu0 0.0
        %939 = vmatprep.subr.mxu0 0.0
        %940 = vmatpush1.msra.mxu0 0.0
        %941 = vmatprep.subr.mxu0 0.0
        %942 = vmatpush1.msra.mxu0 0.0
        %943 = vmatprep.subr.mxu0 0.0
        %944 = vmatpush1.msra.mxu0 0.0
        %945 = vmatprep.subr.mxu0 0.0
        %946 = vmatpush1.msra.mxu0 0.0
        %947 = vmatprep.subr.mxu0 0.0
        %948 = vmatpush1.msra.mxu0 0.0
        %949 = vmatprep.subr.mxu0 0.0
        %950 = vmatpush1.msra.mxu0 0.0
        %951 = vmatprep.subr.mxu0 0.0
        %952 = vmatpush1.msra.mxu0 0.0
        %953 = vmatprep.subr.mxu0 0.0
        %954 = vmatpush1.msra.mxu0 0.0
        %955 = vmatprep.subr.mxu0 0.0
        %956 = vmatpush1.msra.mxu0 0.0
        %957 = vmatprep.subr.mxu0 0.0
        %958 = vmatpush1.msra.mxu0 0.0
        %959 = vmatprep.subr.mxu0 0.0
        %960 = vmatpush1.msra.mxu0 0.0
        %961 = vmatprep.subr.mxu0 0.0
        %962 = vmatpush1.msra.mxu0 0.0
        %963 = vmatprep.subr.mxu0 0.0
        %964 = vmatpush1.msra.mxu0 0.0
        %965 = vmatprep.subr.mxu0 0.0
        %966 = vmatpush1.msra.mxu0 0.0
        %967 = vmatprep.subr.mxu0 0.0
        %968 = vmatpush1.msra.mxu0 0.0
        %969 = vmatprep.subr.mxu0 0.0
        %970 = vmatpush1.msra.mxu0 0.0
        %971 = vmatprep.subr.mxu0 0.0
        %972 = vmatpush1.msra.mxu0 0.0
        %973 = vmatprep.subr.mxu0 0.0
        %974 = vmatpush1.msra.mxu0 0.0
        %975 = vmatprep.subr.mxu0 0.0
        %976 = vmatpush1.msra.mxu0 0.0
        %977 = vmatprep.subr.mxu0 0.0
        %978 = vmatpush1.msra.mxu0 0.0
        %979 = vmatprep.subr.mxu0 0.0
        %980 = vmatpush1.msra.mxu0 0.0
        %981 = vmatprep.subr.mxu0 0.0
        %982 = vmatpush1.msra.mxu0 0.0
        %983 = vmatprep.subr.mxu0 0.0
        %984 = vmatpush1.msra.mxu0 0.0
        %985 = vmatprep.subr.mxu0 0.0
        %986 = vmatpush1.msra.mxu0 0.0
        %987 = vmatprep.mubr.f32.mxu0 0.0
        %988 = vmatmul.mubr.f32.gmra.mrb[0].mxu0 %v823
        %v989 = vpop.f32.mrb[0].mxu0
        %v990 = vadd.f32 %v804, %v989
        %v991 = vpop.f32.mrb[0].mxu0
        %v992 = vadd.f32 %v804, %v991
        %993 = vmatprep.mubr.f32.mxu0 0.0
        %994 = vmatmul.mubr.f32.gmra.mrb[0].mxu0 %v826
        %v995 = vpop.f32.mrb[0].mxu0
        %v996 = vadd.f32 %v809, %v995
        %v997 = vpop.f32.mrb[0].mxu0
        %v998 = vadd.f32 %v809, %v997
        %999 = vmatprep.mubr.f32.mxu0 0.0
        %1000 = vmatmul.mubr.f32.gmra.mrb[0].mxu0 %v829
        %v1001 = vpop.f32.mrb[0].mxu0
        %v1002 = vadd.f32 %v814, %v1001
        %v1003 = vpop.f32.mrb[0].mxu0
        %v1004 = vadd.f32 %v814, %v1003
        %1005 = vmatprep.mubr.f32.mxu0 0.0
        %1006 = vmatmul.mubr.f32.gmra.mrb[0].mxu0 %v832
        %v1007 = vpop.f32.mrb[0].mxu0
        %v1008 = vadd.f32 %v819, %v1007
        %v1009 = vpop.f32.mrb[0].mxu0
        %v1010 = vadd.f32 %v819, %v1009
        %1011 = vdwg.mxu0
        %v1012 = vtanh.pop %v901
        %v1013 = vtanh.pop %v903
        %v1014 = vtanh.pop %v990
        %v1015 = vtanh.pop %v992
        %v1016 = vtanh.pop %v907
        %v1017 = vtanh.pop %v909
        %v1018 = vtanh.pop %v996
        %v1019 = vtanh.pop %v998
        %v1020 = vtanh.pop %v913
        %v1021 = vtanh.pop %v915
        %v1022 = vtanh.pop %v1002
        %v1023 = vtanh.pop %v1004
        %v1024 = vtanh.pop %v919
        %v1025 = vtanh.pop %v921
        %v1026 = vtanh.pop %v1008
        %v1027 = vtanh.pop %v1010
        %v1028 = vld [vmem:[%s5] sm:$0xff]
        %v1029 = vld [vmem:[%s5 + $0x8] sm:$0xff]
        %v1030 = vld [vmem:[%s5 + $0x10] sm:$0xff]
        %v1031 = vld [vmem:[%s5 + $0x18] sm:$0xff]
        %1033 = vset.pattern.permute.xlu0 0
        %1034 = vperm.xlu0 %1033, %v1028
        %v1035 = vpop.permute.xlu0 %1034
        %1038 = vset.pattern.permute.xlu0 0
        %1039 = vperm.xlu0 %1038, %v1029
        %v1040 = vpop.permute.xlu0 %1039
        %1043 = vset.pattern.permute.xlu0 0
        %1044 = vperm.xlu0 %1043, %v1030
        %v1045 = vpop.permute.xlu0 %1044
        %1048 = vset.pattern.permute.xlu0 0
        %1049 = vperm.xlu0 %1048, %v1031
        %v1050 = vpop.permute.xlu0 %1049
        %v1052 = vmul.f32 %v1035, %v1012
        %v1053 = vmul.f32 %v1035, %v1013
        %v1054 = vmul.f32 %v1035, %v1014
        %v1055 = vmul.f32 %v1035, %v1015
        %v1056 = vmul.f32 %v1040, %v1016
        %v1057 = vmul.f32 %v1040, %v1017
        %v1058 = vmul.f32 %v1040, %v1018
        %v1059 = vmul.f32 %v1040, %v1019
        %v1060 = vmul.f32 %v1045, %v1020
        %v1061 = vmul.f32 %v1045, %v1021
        %v1062 = vmul.f32 %v1045, %v1022
        %v1063 = vmul.f32 %v1045, %v1023
        %v1064 = vmul.f32 %v1050, %v1024
        %v1065 = vmul.f32 %v1050, %v1025
        %v1066 = vmul.f32 %v1050, %v1026
        %v1067 = vmul.f32 %v1050, %v1027
        %v1068 = vadd.f32 %v1052, %v1056
        %v1069 = vadd.f32 %v1068, %v1060
        %v1070 = vadd.f32 %v1069, %v1064
        %v1071 = vrot.slane %v1070, 4
        %v1072 = vadd.f32 %v1070, %v1071
        %v1073 = vrot.slane %v1072, 2
        %v1074 = vadd.f32 %v1072, %v1073
        %v1075 = vrot.slane %v1074, 1
        %v1076 = vadd.f32 %v1074, %v1075
        %v1077 = vadd.f32 %v1053, %v1057
        %v1078 = vadd.f32 %v1077, %v1061
        %v1079 = vadd.f32 %v1078, %v1065
        %v1080 = vrot.slane %v1079, 4
        %v1081 = vadd.f32 %v1079, %v1080
        %v1082 = vrot.slane %v1081, 2
        %v1083 = vadd.f32 %v1081, %v1082
        %v1084 = vrot.slane %v1083, 1
        %v1085 = vadd.f32 %v1083, %v1084
        %v1086 = vadd.f32 %v1054, %v1058
        %v1087 = vadd.f32 %v1086, %v1062
        %v1088 = vadd.f32 %v1087, %v1066
        %v1089 = vrot.slane %v1088, 4
        %v1090 = vadd.f32 %v1088, %v1089
        %v1091 = vrot.slane %v1090, 2
        %v1092 = vadd.f32 %v1090, %v1091
        %v1093 = vrot.slane %v1092, 1
        %v1094 = vadd.f32 %v1092, %v1093
        %v1095 = vadd.f32 %v1055, %v1059
        %v1096 = vadd.f32 %v1095, %v1063
        %v1097 = vadd.f32 %v1096, %v1067
        %v1098 = vrot.slane %v1097, 4
        %v1099 = vadd.f32 %v1097, %v1098
        %v1100 = vrot.slane %v1099, 2
        %v1101 = vadd.f32 %v1099, %v1100
        %v1102 = vrot.slane %v1101, 1
        %v1103 = vadd.f32 %v1101, %v1102
        %v1104 = vld [vmem:[#allocation2] sm:$0x1]
        %1106 = vset.pattern.permute.xlu0 0
        %1107 = vperm.xlu0 %1106, %v1104
        %v1108 = vpop.permute.xlu0 %1107
        %v1110 = vlaneseq
        %v1111 = vshrl.u32 %v1110, 7
        %v1112 = vsub.s32 0, %v1111
        %v1113 = vrot.slane %v1108, %v1112
        %v1114 = vadd.f32 %v1076, %v1113
        %v1115 = vadd.f32 %v1085, %v1113
        %v1116 = vadd.f32 %v1094, %v1113
        %v1117 = vadd.f32 %v1103, %v1113
        %v1118 = vxor.u32 %v1114, 2147483648
        %v1119 = vxor.u32 %v1115, 2147483648
        %v1120 = vxor.u32 %v1116, 2147483648
        %v1121 = vxor.u32 %v1117, 2147483648
        %v1122 = vmul.f32 %v1118, 1.442695
        %v1123 = vpow.pop %v1122
        %v1124 = vmul.f32 %v1119, 1.442695
        %v1125 = vpow.pop %v1124
        %v1126 = vmul.f32 %v1120, 1.442695
        %v1127 = vpow.pop %v1126
        %v1128 = vmul.f32 %v1121, 1.442695
        %v1129 = vpow.pop %v1128
        %v1130 = vadd.f32 %v1123, 1.0
        %v1131 = vadd.f32 %v1125, 1.0
        %v1132 = vadd.f32 %v1127, 1.0
        %v1133 = vadd.f32 %v1129, 1.0
        %v1134 = vrcp.pop %v1130
        %v1135 = vmul.f32 1.0, %v1134
        %v1136 = vrcp.pop %v1131
        %v1137 = vmul.f32 1.0, %v1136
        %v1138 = vrcp.pop %v1132
        %v1139 = vmul.f32 1.0, %v1138
        %v1140 = vrcp.pop %v1133
        %v1141 = vmul.f32 1.0, %v1140
        %v1146 = vcombine.low %v1135, %v1137
        %v1147 = vcombine.low %v1139, %v1141
        %v1149 = vunpack.c.l.s4 1966171168
        %v1150 = vunpack.c.0.s8 %v1149
        %v1151 = vlaneseq
        %v1152 = vshrl.u32 %v1151, 7
        %v1153 = vsub.s32 %v1150, %v1152
        %v1154 = vrot.slane %v1146, %v1153
        %v1156 = vunpack.c.l.s4 1966171168
        %v1157 = vunpack.c.0.s8 %v1156
        %v1158 = vlaneseq
        %v1159 = vshrl.u32 %v1158, 7
        %v1160 = vsub.s32 %v1157, %v1159
        %v1161 = vrot.slane %v1147, %v1160
        %v1162 = vcombine.low %v1154, %v1161
        %v1164 = vunpack.c.l.s4 1966171168
        %v1165 = vunpack.c.0.s8 %v1164
        %v1166 = vlaneseq
        %v1167 = vshrl.u32 %v1166, 7
        %v1168 = vsub.s32 %v1165, %v1167
        %v1169 = vrot.slane %v1162, %v1168
        %v1171 = vlaneseq
        %vm1172 = vcmp.ge.s32.totalorder %v1171, 0
        %vm1173 = vcmp.lt.s32.totalorder %v1171, 512
        %vm1174 = vmand %vm1172, %vm1173
        %1175 = vst.msk [vmem:[%s286] sm:$0xf] %vm1174, %v1169
        %s1176 = sand.u32 %s183, 1
        %s1177 = scalar_lea.sflag [#allocation4], %s1176
        %s1178 = sand.u32 %s183, 1
        %s1179 = smul.addr %s1178, 4
        %s1180 = scalar_lea.vmem [#allocation3], %s1179
        // Predicated region
        $region49: #{tpu_custom_call.1} parent=47 // pred_check
          %p1181 = pneg %p193
        $region50: #{tpu_custom_call.1} parent=47 // pred_check_branch
          %1183 = sbr.rel (%p1181) target = $region52
        $region51: #{tpu_custom_call.1} parent=47 // pred_region
          %s1184 = smul.u32 4, %s23
          %s1186 = ssub.s32 64, 64
          %1187 = vsyncadd %s1177, %s1186
          %s1188 = smul.addr %s1184, 16
          %s1189 = scalar_lea.hbm %s7, %s1188
          %s1191 = sshll.u32 %s1180, 4
          %s1192 = int_to_ptr.vmem [resolvable:$true] %s1191
          %1194 = dma.vmem_to_hbm [thread:$0]  %s1192, 64, %s1189, %s1177
        $region52: #{tpu_custom_call.1} parent=47 // pred_fallthru
          _
      $region48: #{tpu_custom_call.1} parent=5 // pred_fallthru
        _
      %p1195 = scmp.le.s32.totalorder 2, %s18
      // Predicated region
      $region53: #{tpu_custom_call.1} parent=5 // pred_check
        %p1196 = pneg %p1195
      $region54: #{tpu_custom_call.1} parent=5 // pred_check_branch
        %1198 = sbr.rel (%p1196) target = $region56
      $region55: #{tpu_custom_call.1} parent=5 // pred_region
        %s1199 = ssub.s32 %s18, 2
        // Predicated region
        $region57: #{tpu_custom_call.1} parent=55 // pred_check
          %p1200 = pneg %p199
        $region58: #{tpu_custom_call.1} parent=55 // pred_check_branch
          %1202 = sbr.rel (%p1200) target = $region60
        $region59: #{tpu_custom_call.1} parent=55 // pred_region
          %s1203 = sand.u32 %s184, 1
          %s1204 = scalar_lea.sflag [#allocation4], %s1203
          %s1205 = sand.u32 %s184, 1
          %s1206 = smul.addr %s1205, 4
          %s1207 = scalar_lea.vmem [#allocation3], %s1206
          %1208 = dma.done %s1204, 64
        $region60: #{tpu_custom_call.1} parent=55 // pred_fallthru
          _
      $region56: #{tpu_custom_call.1} parent=5 // pred_fallthru
        _
    $region6: #{tpu_custom_call.1} parent=1 // loop_footer
      %s22 = sadd.s32 1, %s18
    $region7: #{tpu_custom_call.1} parent=1 // loop_footer_branch
      %17 = sbr.rel target = $region3
    $region8: #{tpu_custom_call.1} parent=1 // loop_exit
      _
    %1209 = vsyncpa [#allocation4], 1
    %s1210 = scalar_lea.sflag [#allocation4], 1
    %1211 = vsyncpa %s1210, 1

</llo_original>
